<compile_context>
chip_gen: v5e
topology: v5e:2x2
jax: 0.10.0
libtpu: 0.0.40
codegen_flags: <defaults>
</compile_context>

<pallas_src>
import jax
import jax.numpy as jnp
from jax import lax
from jax.experimental import pallas as pl
from jax.experimental.pallas import tpu as pltpu

N = 2          # batch
H = W = 4      # spatial size implied by the module: conv1(s=2) -> 2x2, convx -> 1x1

HIGH = lax.Precision.HIGHEST

# ---- weight-slab layout (rows 8-aligned so in-kernel slices stay inside
#      (8,128) tiles; lanes are the 128-wide fast axis) ------------------------
_W12_R, _B12_R = 0, 32          # fused conv weight (32,8) / bias (1,8)
_WF1_R, _BF1_R = 40, 48         # folded fc1 (4,64) / bias (1,64)
_WF2_R, _BF2_R = 56, 120        # fc2 (64,64) / bias (1,64)
_WF3_R, _BF3_R = 128, 192       # fc3 (64,32) / bias (1,32)
_WF4_R = 200                    # fc4 weight (1,32) at lanes 0:32, bias at lane 32
_SLAB_ROWS = 208


# ------------------------------------------------------------------------------
# Pallas kernel: whole forward pass, single program, two VMEM inputs.
# ------------------------------------------------------------------------------
def net_kernel(a_ref, w_ref, o_ref):
    f32 = jnp.float32
    A = a_ref[...]                                            # (N, 32) = [a_re | a_im]

    # fused conv1∘convx as one real matmul on packed complex operands
    Wpk = w_ref[_W12_R:_W12_R + 32, 0:8]                      # (32, 8)
    bpk = w_ref[_B12_R:_B12_R + 1, 0:8]                       # (1, 8) = [b_re | b_im]
    z = jnp.dot(A, Wpk, preferred_element_type=f32) + bpk     # (N, 8)
    z_re, z_im = z[:, 0:4], z[:, 4:8]

    # torch.abs of the complex feature map.
    # TODO(synk): plain sqrt(re^2+im^2); torch uses a hypot-style scaled form
    # (identical result away from overflow, which cannot occur here).
    az = jnp.sqrt(z_re * z_re + z_im * z_im)                  # (N, 4)

    # fc1 with the x4 channel tiling folded into a (4,64) weight (no concat).
    h = jnp.dot(az, w_ref[_WF1_R:_WF1_R + 4, 0:64], preferred_element_type=f32)
    h = jnp.maximum(h + w_ref[_BF1_R:_BF1_R + 1, 0:64], 0.0)
    h = jnp.dot(h, w_ref[_WF2_R:_WF2_R + 64, 0:64], preferred_element_type=f32)
    h = jnp.maximum(h + w_ref[_BF2_R:_BF2_R + 1, 0:64], 0.0)
    h = jnp.dot(h, w_ref[_WF3_R:_WF3_R + 64, 0:32], preferred_element_type=f32)
    h = jnp.maximum(h + w_ref[_BF3_R:_BF3_R + 1, 0:32], 0.0)  # (N, 32)

    # Linear(32, 1), emitted lane-dense as (1, N): contract hidden dim directly.
    wf4 = w_ref[_WF4_R:_WF4_R + 1, 0:32]                      # (1, 32)
    bf4 = w_ref[_WF4_R:_WF4_R + 1, 32:33]                     # (1, 1)
    y = lax.dot_general(wf4, h, (((1,), (1,)), ((), ())),
                        preferred_element_type=f32) + bf4     # (1, N)
    o_ref[...] = y.astype(o_ref.dtype)


# ------------------------------------------------------------------------------
# Parameter construction (deterministic, synthetic).
# ------------------------------------------------------------------------------
def init_params(key):
    ks = jax.random.split(key, 16)
    s = 0.2
    return {
        # conv1: Conv2d(1, 4, (2,2), stride=2), complex
        "c1_w_re": jax.random.normal(ks[0], (4, 1, 2, 2), jnp.float32) * s,
        "c1_w_im": jax.random.normal(ks[1], (4, 1, 2, 2), jnp.float32) * s,
        "c1_b_re": jax.random.normal(ks[2], (4,), jnp.float32) * s,
        "c1_b_im": jax.random.normal(ks[3], (4,), jnp.float32) * s,
        # convx: Conv2d(4, 4, (2,2)), complex  (convy/z/i are unused in forward)
        "cx_w_re": jax.random.normal(ks[4], (4, 4, 2, 2), jnp.float32) * s,
        "cx_w_im": jax.random.normal(ks[5], (4, 4, 2, 2), jnp.float32) * s,
        "cx_b_re": jax.random.normal(ks[6], (4,), jnp.float32) * s,
        "cx_b_im": jax.random.normal(ks[7], (4,), jnp.float32) * s,
        # fc: Linear(16,64), Linear(64,64), Linear(64,32), Linear(32,1)
        "fc1_w": jax.random.normal(ks[8], (64, 16), jnp.float32) * s,
        "fc1_b": jax.random.normal(ks[9], (64,), jnp.float32) * s,
        "fc2_w": jax.random.normal(ks[10], (64, 64), jnp.float32) * s,
        "fc2_b": jax.random.normal(ks[11], (64,), jnp.float32) * s,
        "fc3_w": jax.random.normal(ks[12], (32, 64), jnp.float32) * s,
        "fc3_b": jax.random.normal(ks[13], (32,), jnp.float32) * s,
        "fc4_w": jax.random.normal(ks[14], (1, 32), jnp.float32) * s,
        "fc4_b": jax.random.normal(ks[15], (1,), jnp.float32) * s,
    }


# ------------------------------------------------------------------------------
# Wrapper-side packing (im2col + weight folding; runs once per weight set).
# ------------------------------------------------------------------------------
def _im2col_conv1(x):  # (N,1,4,4) -> (N,16), col = p*4 + k, p=oi*2+oj, k=kh*2+kw
    n = x.shape[0]
    x = x.reshape(n, 2, 2, 2, 2)        # (n, oi, kh, oj, kw)
    x = x.transpose(0, 1, 3, 2, 4)      # (n, oi, oj, kh, kw)
    return x.reshape(n, 16)


def _pack_conv1(w, b):
    # conv1 (stride == kernel) as block-diag (16,16); out col = p*4 + o.
    wf = w.reshape(4, 4)                                  # (O, K)
    wbig = jnp.kron(jnp.eye(4, dtype=w.dtype), wf.T)      # (16, 16)
    bbig = jnp.tile(b, 4).reshape(1, 16)
    return wbig, bbig


def _pack_convx(w, b):
    # convx on a 2x2 map collapses to one matmul matching the conv1 layout.
    wp = w.transpose(0, 2, 3, 1).reshape(4, 16)           # (O2, p*4+c)
    return wp.T, b.reshape(1, 4)                          # (16,4), (1,4)


def _pack_params(p):
    w1r, b1r = _pack_conv1(p["c1_w_re"], p["c1_b_re"])
    w1i, b1i = _pack_conv1(p["c1_w_im"], p["c1_b_im"])
    w2r, b2r = _pack_convx(p["cx_w_re"], p["cx_b_re"])
    w2i, b2i = _pack_convx(p["cx_w_im"], p["cx_b_im"])

    # Fold convx into conv1: composite complex (16 -> 4) weight + bias.
    dot = lambda a, b: jnp.dot(a, b, precision=HIGH)
    Wre = dot(w1r, w2r) - dot(w1i, w2i)                   # (16, 4)
    Wim = dot(w1r, w2i) + dot(w1i, w2r)
    bre = dot(b1r, w2r) - dot(b1i, w2i) + b2r             # (1, 4)
    bim = dot(b1r, w2i) + dot(b1i, w2r) + b2i

    # Real 2x2-block form: [a_re|a_im] @ [[Wre Wim],[-Wim Wre]] = [z_re|z_im].
    Wpk = jnp.concatenate(
        [jnp.concatenate([Wre, Wim], axis=1),
         jnp.concatenate([-Wim, Wre], axis=1)], axis=0)   # (32, 8)
    bpk = jnp.concatenate([bre, bim], axis=1)             # (1, 8)

    # Fold the x4 channel tiling into fc1: cat([az]*4) @ fc1.T == az @ sum-blocks.
    wf1t = p["fc1_w"].T                                   # (16, 64)
    wf1_eff = wf1t[0:4] + wf1t[4:8] + wf1t[8:12] + wf1t[12:16]   # (4, 64)

    slab = jnp.zeros((_SLAB_ROWS, 128), jnp.float32)
    slab = slab.at[_W12_R:_W12_R + 32, 0:8].set(Wpk)
    slab = slab.at[_B12_R, 0:8].set(bpk[0])
    slab = slab.at[_WF1_R:_WF1_R + 4, 0:64].set(wf1_eff)
    slab = slab.at[_BF1_R, 0:64].set(p["fc1_b"])
    slab = slab.at[_WF2_R:_WF2_R + 64, 0:64].set(p["fc2_w"].T)
    slab = slab.at[_BF2_R, 0:64].set(p["fc2_b"])
    slab = slab.at[_WF3_R:_WF3_R + 64, 0:32].set(p["fc3_w"].T)
    slab = slab.at[_BF3_R, 0:32].set(p["fc3_b"])
    slab = slab.at[_WF4_R, 0:32].set(p["fc4_w"][0])
    slab = slab.at[_WF4_R, 32].set(p["fc4_b"][0])
    return slab


@jax.jit
def net_forward(x_re, x_im, p):
    n = x_re.shape[0]
    a = jnp.concatenate([_im2col_conv1(x_re), _im2col_conv1(x_im)], axis=1)  # (N, 32)
    slab = _pack_params(p)
    # TODO(synk): at large batch, tile the batch over a ("parallel",) grid
    # (2 TCs on v7x) and feed bf16 activations/weights to the MXU dots.
    y = pl.pallas_call(
        net_kernel,
        out_shape=jax.ShapeDtypeStruct((1, n), jnp.float32),
        in_specs=[pl.BlockSpec(memory_space=pltpu.MemorySpace.VMEM)] * 2,
        out_specs=pl.BlockSpec(memory_space=pltpu.MemorySpace.VMEM),
    )(a, slab)
    return y[0]                          # final .squeeze() -> (N,)


# ------------------------------------------------------------------------------
# Independent pure-JAX reference: direct strided convolutions + original fc
# weights (no im2col, no weight folding) — validates Conv2d semantics too.
# ------------------------------------------------------------------------------
def net_forward_ref(x_re, x_im, p):
    def rconv(x, w, stride, ho, wo):
        acc = jnp.zeros((x.shape[0], w.shape[0], ho, wo), jnp.float32)
        for kh in range(2):
            for kw in range(2):
                patch = x[:, :, kh:kh + stride * ho:stride, kw:kw + stride * wo:stride]
                acc = acc + jnp.einsum('ncij,oc->noij', patch, w[:, :, kh, kw],
                                       precision=HIGH)
        return acc

    br = lambda b: b[None, :, None, None]
    # conv1 (complex, stride 2): (N,1,4,4) -> (N,4,2,2)
    r_re = rconv(x_re, p["c1_w_re"], 2, 2, 2) - rconv(x_im, p["c1_w_im"], 2, 2, 2) + br(p["c1_b_re"])
    r_im = rconv(x_re, p["c1_w_im"], 2, 2, 2) + rconv(x_im, p["c1_w_re"], 2, 2, 2) + br(p["c1_b_im"])
    # convx (complex, stride 1): (N,4,2,2) -> (N,4,1,1); reused 4x in forward
    z_re = rconv(r_re, p["cx_w_re"], 1, 1, 1) - rconv(r_im, p["cx_w_im"], 1, 1, 1) + br(p["cx_b_re"])
    z_im = rconv(r_re, p["cx_w_im"], 1, 1, 1) + rconv(r_im, p["cx_w_re"], 1, 1, 1) + br(p["cx_b_im"])

    az = jnp.sqrt(z_re ** 2 + z_im ** 2)[:, :, 0, 0]                 # (N, 4)
    x16 = jnp.concatenate([az, az, az, az], axis=-1)                 # cat along channels
    mm = lambda a, b: jnp.dot(a, b, precision=HIGH)
    h = jnp.maximum(mm(x16, p["fc1_w"].T) + p["fc1_b"], 0.0)
    h = jnp.maximum(mm(h, p["fc2_w"].T) + p["fc2_b"], 0.0)
    h = jnp.maximum(mm(h, p["fc3_w"].T) + p["fc3_b"], 0.0)
    y = mm(h, p["fc4_w"].T) + p["fc4_b"]
    return y[:, 0]


if __name__ == "__main__":
    key = jax.random.PRNGKey(0)
    kx, kp = jax.random.split(key)
    kxr, kxi = jax.random.split(kx)

    # complex64 input x of shape (N, 1, 4, 4), stored as real/imag float32 planes
    x_re = jax.random.normal(kxr, (N, 1, H, W), jnp.float32)
    x_im = jax.random.normal(kxi, (N, 1, H, W), jnp.float32)
    params = init_params(kp)

    out = net_forward(x_re, x_im, params)
    out = jax.block_until_ready(out)

    ref = net_forward_ref(x_re, x_im, params)
    assert out.shape == (N,), out.shape
    assert jnp.allclose(out, ref, rtol=2e-3, atol=2e-3), (out, ref)

    print("KERNEL_OK")
</pallas_src>

<mosaic_0001>
module attributes {stable_mosaic.version = 11 : i64} {
  func.func @net_kernel(%arg0: memref<2x32xf32, #tpu.memory_space<vmem>>, %arg1: memref<208x128xf32, #tpu.memory_space<vmem>>, %arg2: memref<1x2xf32, #tpu.memory_space<vmem>>) attributes {dimension_semantics = [], scalar_prefetch = 0 : i64, scratch_operands = 0 : i64, tpu.core_type = #tpu.core_type<tc>} {
    %c0 = arith.constant 0 : index
    %c0_0 = arith.constant 0 : index
    %0 = vector.load %arg0[%c0, %c0_0] : memref<2x32xf32, #tpu.memory_space<vmem>>, vector<2x32xf32>
    %c0_1 = arith.constant 0 : index
    %c0_2 = arith.constant 0 : index
    %1 = vector.load %arg1[%c0_1, %c0_2] : memref<208x128xf32, #tpu.memory_space<vmem>>, vector<32x8xf32>
    %c32 = arith.constant 32 : index
    %c0_3 = arith.constant 0 : index
    %2 = vector.load %arg1[%c32, %c0_3] : memref<208x128xf32, #tpu.memory_space<vmem>>, vector<1x8xf32>
    %cst = arith.constant dense<0.000000e+00> : vector<2x8xf32>
    %3 = tpu.matmul %0, %1, %cst {dimension_numbers = #tpu.dot_dimension_numbers<[1], [0], [0], [1], [0, 0, 1, 1], [], []>} : vector<2x32xf32>, vector<32x8xf32>, vector<2x8xf32> -> vector<2x8xf32>
    %4 = vector.broadcast %2 : vector<1x8xf32> to vector<2x8xf32>
    %5 = arith.addf %3, %4 : vector<2x8xf32>
    %6 = vector.extract_strided_slice %5 {offsets = [0, 0], sizes = [2, 4], strides = [1, 1]} : vector<2x8xf32> to vector<2x4xf32>
    %7 = vector.extract_strided_slice %5 {offsets = [0, 4], sizes = [2, 4], strides = [1, 1]} : vector<2x8xf32> to vector<2x4xf32>
    %8 = arith.mulf %6, %6 : vector<2x4xf32>
    %9 = arith.mulf %7, %7 : vector<2x4xf32>
    %10 = arith.addf %8, %9 : vector<2x4xf32>
    %11 = math.sqrt %10 : vector<2x4xf32>
    %c40 = arith.constant 40 : index
    %c0_4 = arith.constant 0 : index
    %12 = vector.load %arg1[%c40, %c0_4] : memref<208x128xf32, #tpu.memory_space<vmem>>, vector<4x64xf32>
    %cst_5 = arith.constant dense<0.000000e+00> : vector<2x64xf32>
    %13 = tpu.matmul %11, %12, %cst_5 {dimension_numbers = #tpu.dot_dimension_numbers<[1], [0], [0], [1], [0, 0, 1, 1], [], []>} : vector<2x4xf32>, vector<4x64xf32>, vector<2x64xf32> -> vector<2x64xf32>
    %c48 = arith.constant 48 : index
    %c0_6 = arith.constant 0 : index
    %14 = vector.load %arg1[%c48, %c0_6] : memref<208x128xf32, #tpu.memory_space<vmem>>, vector<1x64xf32>
    %15 = vector.broadcast %14 : vector<1x64xf32> to vector<2x64xf32>
    %16 = arith.addf %13, %15 : vector<2x64xf32>
    %cst_7 = arith.constant 0.000000e+00 : f32
    %17 = vector.broadcast %cst_7 : f32 to vector<2x64xf32>
    %18 = arith.maximumf %16, %17 : vector<2x64xf32>
    %c56 = arith.constant 56 : index
    %c0_8 = arith.constant 0 : index
    %19 = vector.load %arg1[%c56, %c0_8] : memref<208x128xf32, #tpu.memory_space<vmem>>, vector<64x64xf32>
    %cst_9 = arith.constant dense<0.000000e+00> : vector<2x64xf32>
    %20 = tpu.matmul %18, %19, %cst_9 {dimension_numbers = #tpu.dot_dimension_numbers<[1], [0], [0], [1], [0, 0, 1, 1], [], []>} : vector<2x64xf32>, vector<64x64xf32>, vector<2x64xf32> -> vector<2x64xf32>
    %c120 = arith.constant 120 : index
    %c0_10 = arith.constant 0 : index
    %21 = vector.load %arg1[%c120, %c0_10] : memref<208x128xf32, #tpu.memory_space<vmem>>, vector<1x64xf32>
    %22 = vector.broadcast %21 : vector<1x64xf32> to vector<2x64xf32>
    %23 = arith.addf %20, %22 : vector<2x64xf32>
    %cst_11 = arith.constant 0.000000e+00 : f32
    %24 = vector.broadcast %cst_11 : f32 to vector<2x64xf32>
    %25 = arith.maximumf %23, %24 : vector<2x64xf32>
    %c128 = arith.constant 128 : index
    %c0_12 = arith.constant 0 : index
    %26 = vector.load %arg1[%c128, %c0_12] : memref<208x128xf32, #tpu.memory_space<vmem>>, vector<64x32xf32>
    %cst_13 = arith.constant dense<0.000000e+00> : vector<2x32xf32>
    %27 = tpu.matmul %25, %26, %cst_13 {dimension_numbers = #tpu.dot_dimension_numbers<[1], [0], [0], [1], [0, 0, 1, 1], [], []>} : vector<2x64xf32>, vector<64x32xf32>, vector<2x32xf32> -> vector<2x32xf32>
    %c192 = arith.constant 192 : index
    %c0_14 = arith.constant 0 : index
    %28 = vector.load %arg1[%c192, %c0_14] : memref<208x128xf32, #tpu.memory_space<vmem>>, vector<1x32xf32>
    %29 = vector.broadcast %28 : vector<1x32xf32> to vector<2x32xf32>
    %30 = arith.addf %27, %29 : vector<2x32xf32>
    %cst_15 = arith.constant 0.000000e+00 : f32
    %31 = vector.broadcast %cst_15 : f32 to vector<2x32xf32>
    %32 = arith.maximumf %30, %31 : vector<2x32xf32>
    %c200 = arith.constant 200 : index
    %c0_16 = arith.constant 0 : index
    %33 = vector.load %arg1[%c200, %c0_16] : memref<208x128xf32, #tpu.memory_space<vmem>>, vector<1x32xf32>
    %c200_17 = arith.constant 200 : index
    %c32_18 = arith.constant 32 : index
    %34 = vector.load %arg1[%c200_17, %c32_18] : memref<208x128xf32, #tpu.memory_space<vmem>>, vector<1x1xf32>
    %cst_19 = arith.constant dense<0.000000e+00> : vector<1x2xf32>
    %35 = tpu.matmul %33, %32, %cst_19 {dimension_numbers = #tpu.dot_dimension_numbers<[1], [1], [0], [0], [0, 0, 1, 0], [], []>} : vector<1x32xf32>, vector<2x32xf32>, vector<1x2xf32> -> vector<1x2xf32>
    %36 = vector.broadcast %34 : vector<1x1xf32> to vector<1x2xf32>
    %37 = arith.addf %35, %36 : vector<1x2xf32>
    %c0_20 = arith.constant 0 : index
    %c0_21 = arith.constant 0 : index
    %38 = vector.load %arg2[%c0_20, %c0_21] : memref<1x2xf32, #tpu.memory_space<vmem>>, vector<1x2xf32>
    tpu.vector_store %arg2[%c0_20, %c0_21], %37 {strides = array<i32>} : memref<1x2xf32, #tpu.memory_space<vmem>>, vector<1x2xf32>,
    return
  }
}

</mosaic_0001>

<llo_original>
// kernel: net_forward.1
$region0: #{net_forward.1}
  #allocation0 [shape = 'u32[]', space=smem, size = 0x4, offset = 0x4, fixed_abs, tag = 'smem constant byte address 0x4 - core index']
  #allocation1 [shape = 'u32[72,128]{1,0:T(1,128)}', space=vmem, size = 0x9000, scoped, tag = 'internal scratch']
  %s0 = inlined_call_operand.vmem [shape: f32[2,32], index: 0, kind: input, shape index: {}]
  %s1 = inlined_call_operand.vmem [shape: f32[208,128], index: 1, kind: input, shape index: {}]
  %s2 = inlined_call_operand.hbm [shape: f32[1,2], index: 2, kind: output, shape index: {}]
  %s3 = sld [smem:[#allocation0]]
  $region18: #{net_forward.1} parent=0
    _
  %s5 = ssub.s32 1, %s3
  %s6 = scalar_select 0, %s5, %s3
  $region1: #{net_forward.1} parent=0
    #allocation2 [shape = 'u8[512]{0}', space=vmem, size = 0x400, scoped, tag = 'output window, operand 0, single buffered']
    #allocation3 [shape = 's32[1]{0}', space=sflag, size = 0x4, scoped, tag = 'scoped memory for net_forward.1']
    %7 = vsyncpa [#allocation3], 0
    // Predicated region
    $region2: #{net_forward.1} parent=1 // pred_check
      _
    $region3: #{net_forward.1} parent=1 // pred_check_branch
      %9 = sbr.rel (0) target = $region5
    $region4: #{net_forward.1} parent=1 // pred_region
      _
    $region5: #{net_forward.1} parent=1 // pred_fallthru
      _
    // Predicated region
    $region6: #{net_forward.1} parent=1 // pred_check
      _
    $region7: #{net_forward.1} parent=1 // pred_check_branch
      %11 = sbr.rel (0) target = $region9
    $region8: #{net_forward.1} parent=1 // pred_region
      _
    $region9: #{net_forward.1} parent=1 // pred_fallthru
      _
    %v12 = vld [vmem:[%s0] sm:$0x3]
    %v13 = vld [vmem:[%s1] sm:$0xff]
    %v14 = vld [vmem:[%s1 + $0x8] sm:$0xff]
    %v15 = vld [vmem:[%s1 + $0x10] sm:$0xff]
    %v16 = vld [vmem:[%s1 + $0x18] sm:$0xff]
    %v17 = vld [vmem:[%s1 + $0x20] sm:$0x1]
    %v18 = vperm.slane %v17, 0
    %vm19 = vcmask 261120
    %v21 = vsel %vm19, %v12, 0
    %23 = vmatpush.msra.mxu0 0.0
    %24 = vmatpush.msra.mxu0 0.0
    %25 = vmatpush.msra.mxu0 0.0
    %26 = vmatpush.msra.mxu0 0.0
    %27 = vmatpush.msra.mxu0 0.0
    %28 = vmatpush.msra.mxu0 0.0
    %29 = vmatpush.msra.mxu0 0.0
    %30 = vmatpush.msra.mxu0 0.0
    %31 = vmatpush.msra.mxu0 0.0
    %32 = vmatpush.msra.mxu0 0.0
    %33 = vmatpush.msra.mxu0 0.0
    %34 = vmatpush.msra.mxu0 0.0
    %35 = vmatpush.msra.mxu0 %v16
    %36 = vmatpush.msra.mxu0 %v15
    %37 = vmatpush.msra.mxu0 %v14
    %38 = vmatpush.msra.mxu0 %v13
    %39 = vmatmul.f32.gmra.mxu0 %v21
    %v40 = vpop.f32.mrf.mxu0
    %v41 = vadd.f32 %v18, %v40
    %42 = vdwg.mxu0
    %v43 = vmul.f32 %v41, %v41
    %45 = vrot.lane.b32.xlu0 %v43, 124
    %v46 = vpop.permute.xlu0 %45
    %v48 = vadd.f32 %v43, %v46
    %v49 = vrsqrt.pop %v48
    %v50 = vmul.f32 %v49, %v48
    %v51 = vmul.f32 %v50, %v49
    %v52 = vmul.f32 0.5, %v51
    %v53 = vsub.f32 1.5, %v52
    %v54 = vmul.f32 %v49, %v53
    %v55 = vmul.f32 %v48, %v54
    %vm56 = vcmp.eq.f32.partialorder %v48, inf
    %v57 = vsel %vm56, %v48, %v55
    %vm58 = vcmp.eq.f32.partialorder %v48, 0.0
    %v59 = vand.u32 %v48, 2147483648
    %v60 = vsel %vm58, %v59, %v57
    %v61 = vld [vmem:[%s1 + $0x28] sm:$0xf]
    %v62 = vld [vmem:[%s1 + $0x30] sm:$0x1]
    %v63 = vperm.slane %v62, 0
    %vm64 = vcmask 31744
    %v66 = vsel %vm64, %v60, 0
    %vm68 = vcmask 1043456
    %v70 = vsel %vm68, %v61, 0
    %72 = vmatpush.msra.mxu0 0.0
    %73 = vmatpush.msra.mxu0 0.0
    %74 = vmatpush.msra.mxu0 0.0
    %75 = vmatpush.msra.mxu0 0.0
    %76 = vmatpush.msra.mxu0 0.0
    %77 = vmatpush.msra.mxu0 0.0
    %78 = vmatpush.msra.mxu0 0.0
    %79 = vmatpush.msra.mxu0 0.0
    %80 = vmatpush.msra.mxu0 0.0
    %81 = vmatpush.msra.mxu0 0.0
    %82 = vmatpush.msra.mxu0 0.0
    %83 = vmatpush.msra.mxu0 0.0
    %84 = vmatpush.msra.mxu0 0.0
    %85 = vmatpush.msra.mxu0 0.0
    %86 = vmatpush.msra.mxu0 0.0
    %87 = vmatpush.msra.mxu0 %v70
    %88 = vmatmul.f32.gmra.mxu0 %v66
    %v89 = vpop.f32.mrf.mxu0
    %v90 = vadd.f32 %v63, %v89
    %91 = vdwg.mxu0
    %v92 = vmax.f32 %v90, 0.0
    %v93 = vld [vmem:[%s1 + $0x38] sm:$0xff]
    %v94 = vld [vmem:[%s1 + $0x40] sm:$0xff]
    %v95 = vld [vmem:[%s1 + $0x48] sm:$0xff]
    %v96 = vld [vmem:[%s1 + $0x50] sm:$0xff]
    %v97 = vld [vmem:[%s1 + $0x58] sm:$0xff]
    %v98 = vld [vmem:[%s1 + $0x60] sm:$0xff]
    %v99 = vld [vmem:[%s1 + $0x68] sm:$0xff]
    %v100 = vld [vmem:[%s1 + $0x70] sm:$0xff]
    %v101 = vld [vmem:[%s1 + $0x78] sm:$0x1]
    %v102 = vperm.slane %v101, 0
    %vm103 = vcmask 523264
    %v105 = vsel %vm103, %v92, 0
    %107 = vmatpush.msra.mxu0 0.0
    %108 = vmatpush.msra.mxu0 0.0
    %109 = vmatpush.msra.mxu0 0.0
    %110 = vmatpush.msra.mxu0 0.0
    %111 = vmatpush.msra.mxu0 0.0
    %112 = vmatpush.msra.mxu0 0.0
    %113 = vmatpush.msra.mxu0 0.0
    %114 = vmatpush.msra.mxu0 0.0
    %115 = vmatpush.msra.mxu0 %v100
    %116 = vmatpush.msra.mxu0 %v99
    %117 = vmatpush.msra.mxu0 %v98
    %118 = vmatpush.msra.mxu0 %v97
    %119 = vmatpush.msra.mxu0 %v96
    %120 = vmatpush.msra.mxu0 %v95
    %121 = vmatpush.msra.mxu0 %v94
    %122 = vmatpush.msra.mxu0 %v93
    %123 = vmatmul.f32.gmra.mxu0 %v105
    %v124 = vpop.f32.mrf.mxu0
    %v125 = vadd.f32 %v102, %v124
    %126 = vdwg.mxu0
    %v127 = vmax.f32 %v125, 0.0
    %v128 = vld [vmem:[%s1 + $0x80] sm:$0xff]
    %v129 = vld [vmem:[%s1 + $0x88] sm:$0xff]
    %v130 = vld [vmem:[%s1 + $0x90] sm:$0xff]
    %v131 = vld [vmem:[%s1 + $0x98] sm:$0xff]
    %v132 = vld [vmem:[%s1 + $0xa0] sm:$0xff]
    %v133 = vld [vmem:[%s1 + $0xa8] sm:$0xff]
    %v134 = vld [vmem:[%s1 + $0xb0] sm:$0xff]
    %v135 = vld [vmem:[%s1 + $0xb8] sm:$0xff]
    %v136 = vld [vmem:[%s1 + $0xc0] sm:$0x1]
    %v137 = vperm.slane %v136, 0
    %v139 = vsel %vm103, %v127, 0
    %141 = vmatpush.msra.mxu0 0.0
    %142 = vmatpush.msra.mxu0 0.0
    %143 = vmatpush.msra.mxu0 0.0
    %144 = vmatpush.msra.mxu0 0.0
    %145 = vmatpush.msra.mxu0 0.0
    %146 = vmatpush.msra.mxu0 0.0
    %147 = vmatpush.msra.mxu0 0.0
    %148 = vmatpush.msra.mxu0 0.0
    %149 = vmatpush.msra.mxu0 %v135
    %150 = vmatpush.msra.mxu0 %v134
    %151 = vmatpush.msra.mxu0 %v133
    %152 = vmatpush.msra.mxu0 %v132
    %153 = vmatpush.msra.mxu0 %v131
    %154 = vmatpush.msra.mxu0 %v130
    %155 = vmatpush.msra.mxu0 %v129
    %156 = vmatpush.msra.mxu0 %v128
    %157 = vmatmul.f32.gmra.mxu0 %v139
    %v158 = vpop.f32.mrf.mxu0
    %v159 = vadd.f32 %v137, %v158
    %160 = vdwg.mxu0
    %v161 = vmax.f32 %v159, 0.0
    %v162 = vld [vmem:[%s1 + $0xc8] sm:$0x1]
    %164 = vset.pattern.permute.xlu0 32
    %165 = vperm.xlu0 %164, %v162
    %v166 = vpop.permute.xlu0 %165
    %v168 = vsel %vm19, %v162, 0
    %v171 = vsel %vm19, %v161, 0
    %173 = vmatpush.xpose.msra.mxu0 0.0
    %174 = vmatpush.xpose.msra.mxu0 0.0
    %175 = vmatpush.xpose.msra.mxu0 0.0
    %176 = vmatpush.xpose.msra.mxu0 0.0
    %177 = vmatpush.xpose.msra.mxu0 0.0
    %178 = vmatpush.xpose.msra.mxu0 0.0
    %179 = vmatpush.xpose.msra.mxu0 0.0
    %180 = vmatpush.xpose.msra.mxu0 0.0
    %181 = vmatpush.xpose.msra.mxu0 0.0
    %182 = vmatpush.xpose.msra.mxu0 0.0
    %183 = vmatpush.xpose.msra.mxu0 0.0
    %184 = vmatpush.xpose.msra.mxu0 0.0
    %185 = vmatpush.xpose.msra.mxu0 0.0
    %186 = vmatpush.xpose.msra.mxu0 0.0
    %187 = vmatpush.xpose.msra.mxu0 0.0
    %188 = vmatpush.xpose.msra.mxu0 %v171
    %189 = vmatmul.f32.gmra.mxu0 %v168
    %v190 = vpop.f32.mrf.mxu0
    %v191 = vadd.f32 %v166, %v190
    %192 = vdwg.mxu0
    %vm193 = vcmask 8192
    %194 = vst.msk [vmem:[#allocation2] sm:$0x1] %vm193, %v191
    // Predicated region
    $region10: #{net_forward.1} parent=1 // pred_check
      _
    $region11: #{net_forward.1} parent=1 // pred_check_branch
      %196 = sbr.rel (0) target = $region13
    $region12: #{net_forward.1} parent=1 // pred_region
      %198 = vsyncadd [#allocation3], 0
      %s200 = sshll.u32 [#allocation2], 4
      %s201 = int_to_ptr.vmem [resolvable:$true] %s200
      %s202 = sshll.u32 %s2, 4
      %s203 = int_to_ptr.hbm [resolvable:$true] %s202
      %205 = dma.vmem_to_hbm [thread:$0]  %s201, 16, %s203, [#allocation3]
    $region13: #{net_forward.1} parent=1 // pred_fallthru
      _
    // Predicated region
    $region14: #{net_forward.1} parent=1 // pred_check
      _
    $region15: #{net_forward.1} parent=1 // pred_check_branch
      %207 = sbr.rel (0) target = $region17
    $region16: #{net_forward.1} parent=1 // pred_region
      %209 = dma.done [#allocation3], 16
    $region17: #{net_forward.1} parent=1 // pred_fallthru
      _
    %210 = vsyncpa [#allocation3], 1

</llo_original>
